<compile_context>
chip_gen: v6e
topology: v6e:2x2x1
jax: 0.10.0
libtpu: 0.0.40
codegen_flags: <defaults>
</compile_context>

<pallas_src>
import jax
import jax.numpy as jnp
from jax.experimental import pallas as pl
from jax.experimental.pallas import tpu as pltpu

ORDER_NUM = 2
NEG_SLOPE = 1.0     # float(True) — identity activation (see note above)


def _leaky_relu(x, slope=NEG_SLOPE):
    return jnp.where(x >= 0, x, slope * x)


def lilynn_kernel(scal_ref, x0_ref, x1_ref, d_ref, out_ref):
    # scal_ref (SMEM, (4,) f32): [c0, c1, cb, db]
    c0 = scal_ref[0]
    c1 = scal_ref[1]
    cb = scal_ref[2]
    db = scal_ref[3]
    # Folded projecting_layer1: Linear(2,H) -> identity -> Linear(H,1)
    y = c0 * x0_ref[...] + c1 * x1_ref[...] + cb                # (F, TB)
    # Folded projecting_layer2: Linear(F,H) -> identity -> Linear(H,1)
    z = jnp.sum(y * d_ref[...], axis=0, keepdims=True) + db     # (1, TB) lane-dense
    out_ref[...] = jax.nn.sigmoid(z)


def lilynn_forward(x, params, *, tb=512):
    """x: (B, F, 2) float32.  params: unfolded per-layer weights (init_params)."""
    B, F, O = x.shape
    assert O == ORDER_NUM
    w1, b1, w2, b2, w3, b3, w4, b4 = params

    # ---- host-side exact folding (activations are identities) --------------
    c = (w1 @ w2)[:, 0]                           # (2,)
    cb = (b1 @ w2)[0] + b2[0]                     # scalar
    d = (w3 @ w4).astype(jnp.float32)             # (F, 1)  folded layer-2 weight
    db = (b3 @ w4)[0] + b4[0]                     # scalar
    scal = jnp.stack([c[0], c[1], cb, db]).astype(jnp.float32)   # (4,) -> SMEM

    # ---- lane-dense relayout: batch on the 128-lane axis --------------------
    x0t = x[..., 0].T.astype(jnp.float32)         # (F, B)
    x1t = x[..., 1].T.astype(jnp.float32)         # (F, B)

    if B <= tb:                                   # single block == full array dims
        tb_eff, b_pad = B, B
    else:
        assert tb % 128 == 0, "batch tile must be lane-aligned (multiple of 128)"
        tb_eff = tb
        b_pad = ((B + tb - 1) // tb) * tb
        if b_pad != B:
            pad = ((0, 0), (0, b_pad - B))
            x0t = jnp.pad(x0t, pad)
            x1t = jnp.pad(x1t, pad)

    grid = (b_pad // tb_eff,)
    out = pl.pallas_call(
        lilynn_kernel,
        out_shape=jax.ShapeDtypeStruct((1, b_pad), jnp.float32),
        grid_spec=pltpu.PrefetchScalarGridSpec(
            num_scalar_prefetch=0,
            grid=grid,
            in_specs=[
                pl.BlockSpec(memory_space=pltpu.MemorySpace.SMEM),  # folded scalars
                pl.BlockSpec((F, tb_eff), lambda i: (0, i)),        # x order-0 plane
                pl.BlockSpec((F, tb_eff), lambda i: (0, i)),        # x order-1 plane
                pl.BlockSpec((F, 1), lambda i: (0, 0)),             # d, VMEM-resident
            ],
            out_specs=pl.BlockSpec((1, tb_eff), lambda i: (0, i)),
        ),
        compiler_params=pltpu.CompilerParams(
            dimension_semantics=("parallel",),   # shard batch tiles across v7x's 2 TCs
        ),
    )(scal, x0t, x1t, d)
    return out[0, :B]                            # -> (B,), the final squeeze(-1)


def init_params(key, feature_num, hidden_size, order_num=ORDER_NUM):
    """PyTorch-style uniform(-1/sqrt(fan_in)) init, weights stored (in, out)."""
    ks = jax.random.split(key, 8)

    def lin(kw, kb, fan_in, fan_out):
        bound = 1.0 / jnp.sqrt(jnp.float32(fan_in))
        w = jax.random.uniform(kw, (fan_in, fan_out), jnp.float32, -bound, bound)
        b = jax.random.uniform(kb, (fan_out,), jnp.float32, -bound, bound)
        return w, b

    w1, b1 = lin(ks[0], ks[1], order_num, hidden_size)     # Linear(2, H)
    w2, b2 = lin(ks[2], ks[3], hidden_size, 1)             # Linear(H, 1)
    w3, b3 = lin(ks[4], ks[5], feature_num, hidden_size)   # Linear(F, H)
    w4, b4 = lin(ks[6], ks[7], hidden_size, 1)             # Linear(H, 1)
    return (w1, b1, w2, b2, w3, b3, w4, b4)


def lilynn_reference(x, params):
    """Pure-JAX per-layer reference matching the PyTorch forward exactly."""
    w1, b1, w2, b2, w3, b3, w4, b4 = params
    h1 = _leaky_relu(jnp.einsum('bfo,oh->bfh', x, w1) + b1)   # (B, F, H)
    y = (h1 @ w2)[..., 0] + b2[0]                             # (B, F)  squeeze(-1)
    h2 = _leaky_relu(y @ w3 + b3)                             # (B, H)
    z = (h2 @ w4)[:, 0] + b4[0]                               # (B,)
    return jax.nn.sigmoid(z)                                  # (B,)  squeeze(-1)


if __name__ == "__main__":
    # B > tile so the grid / padding / pipelining path is exercised.
    B, FEATURE_NUM, HIDDEN = 200, 16, 32
    key = jax.random.PRNGKey(0)
    kx, kp = jax.random.split(key)
    x = jax.random.normal(kx, (B, FEATURE_NUM, ORDER_NUM), jnp.float32)
    params = init_params(kp, FEATURE_NUM, HIDDEN)

    out = jax.block_until_ready(lilynn_forward(x, params, tb=128))
    ref = lilynn_reference(x, params)

    assert out.shape == (B,), out.shape
    assert jnp.allclose(out, ref, atol=1e-5, rtol=1e-5), (out, ref)
    print("KERNEL_OK")
</pallas_src>

<mosaic_0001>
module attributes {stable_mosaic.version = 11 : i64} {
  func.func @lilynn_kernel(%arg0: i32, %arg1: memref<4xf32, #tpu.memory_space<smem>>, %arg2: memref<16x128xf32, #tpu.memory_space<vmem>>, %arg3: memref<16x128xf32, #tpu.memory_space<vmem>>, %arg4: memref<16x1xf32, #tpu.memory_space<vmem>>, %arg5: memref<1x128xf32, #tpu.memory_space<vmem>>) attributes {dimension_semantics = [#tpu.dimension_semantics<parallel>], iteration_bounds = array<i64: 2>, scalar_prefetch = 0 : i64, scratch_operands = 0 : i64, tpu.core_type = #tpu.core_type<tc>, window_params = [{transform_indices = @transform_0, window_bounds = array<i64: 4>}, {transform_indices = @transform_1, window_bounds = array<i64: 16, 128>}, {transform_indices = @transform_2, window_bounds = array<i64: 16, 128>}, {pipeline_mode = #tpu.pipeline_mode<synchronous>, transform_indices = @transform_3, window_bounds = array<i64: 16, 1>}, {transform_indices = @transform_4, window_bounds = array<i64: 1, 128>}]} {
    %c0 = arith.constant 0 : index
    %0 = memref.load %arg1[%c0] : memref<4xf32, #tpu.memory_space<smem>>
    %c1 = arith.constant 1 : index
    %1 = memref.load %arg1[%c1] : memref<4xf32, #tpu.memory_space<smem>>
    %c2 = arith.constant 2 : index
    %2 = memref.load %arg1[%c2] : memref<4xf32, #tpu.memory_space<smem>>
    %c3 = arith.constant 3 : index
    %3 = memref.load %arg1[%c3] : memref<4xf32, #tpu.memory_space<smem>>
    %c0_0 = arith.constant 0 : index
    %c0_1 = arith.constant 0 : index
    %4 = vector.load %arg2[%c0_0, %c0_1] : memref<16x128xf32, #tpu.memory_space<vmem>>, vector<16x128xf32>
    %5 = vector.broadcast %0 : f32 to vector<16x128xf32>
    %6 = arith.mulf %5, %4 : vector<16x128xf32>
    %c0_2 = arith.constant 0 : index
    %c0_3 = arith.constant 0 : index
    %7 = vector.load %arg3[%c0_2, %c0_3] : memref<16x128xf32, #tpu.memory_space<vmem>>, vector<16x128xf32>
    %8 = vector.broadcast %1 : f32 to vector<16x128xf32>
    %9 = arith.mulf %8, %7 : vector<16x128xf32>
    %10 = arith.addf %6, %9 : vector<16x128xf32>
    %11 = vector.broadcast %2 : f32 to vector<16x128xf32>
    %12 = arith.addf %10, %11 : vector<16x128xf32>
    %c0_4 = arith.constant 0 : index
    %c0_5 = arith.constant 0 : index
    %13 = vector.load %arg4[%c0_4, %c0_5] : memref<16x1xf32, #tpu.memory_space<vmem>>, vector<16x1xf32>
    %14 = vector.broadcast %13 : vector<16x1xf32> to vector<16x128xf32>
    %15 = arith.mulf %12, %14 : vector<16x128xf32>
    %cst = arith.constant dense<0.000000e+00> : vector<128xf32>
    %16 = vector.multi_reduction <add>, %15, %cst [0] : vector<16x128xf32> to vector<128xf32>
    %17 = vector.shape_cast %16 : vector<128xf32> to vector<1x128xf32>
    %18 = vector.broadcast %3 : f32 to vector<1x128xf32>
    %19 = arith.addf %17, %18 : vector<1x128xf32>
    %20 = arith.negf %19 : vector<1x128xf32>
    %21 = math.exp %20 : vector<1x128xf32>
    %cst_6 = arith.constant 1.000000e+00 : f32
    %22 = vector.broadcast %cst_6 : f32 to vector<1x128xf32>
    %23 = arith.addf %22, %21 : vector<1x128xf32>
    %24 = arith.divf %22, %23 : vector<1x128xf32>
    %c0_7 = arith.constant 0 : index
    %c0_8 = arith.constant 0 : index
    %25 = vector.load %arg5[%c0_7, %c0_8] : memref<1x128xf32, #tpu.memory_space<vmem>>, vector<1x128xf32>
    tpu.vector_store %arg5[%c0_7, %c0_8], %24 {strides = array<i32>} : memref<1x128xf32, #tpu.memory_space<vmem>>, vector<1x128xf32>,
    return
  }
  func.func @transform_0(%arg0: i32) -> i32 {
    %c0_i32 = arith.constant 0 : i32
    %c0_i32_0 = arith.constant 0 : i32
    return %c0_i32 : i32
  }
  func.func @transform_1(%arg0: i32) -> (i32, i32) {
    %c0_i32 = arith.constant 0 : i32
    %c0_i32_0 = arith.constant 0 : i32
    return %c0_i32, %arg0 : i32, i32
  }
  func.func @transform_2(%arg0: i32) -> (i32, i32) {
    %c0_i32 = arith.constant 0 : i32
    %c0_i32_0 = arith.constant 0 : i32
    return %c0_i32, %arg0 : i32, i32
  }
  func.func @transform_3(%arg0: i32) -> (i32, i32) {
    %c0_i32 = arith.constant 0 : i32
    %c0_i32_0 = arith.constant 0 : i32
    %c0_i32_1 = arith.constant 0 : i32
    return %c0_i32, %c0_i32_0 : i32, i32
  }
  func.func @transform_4(%arg0: i32) -> (i32, i32) {
    %c0_i32 = arith.constant 0 : i32
    %c0_i32_0 = arith.constant 0 : i32
    return %c0_i32, %arg0 : i32, i32
  }
}

</mosaic_0001>

<llo_original>
// kernel: tpu_custom_call.1
$region0: #{tpu_custom_call.1}
  #allocation0 [shape = 'u32[]', space=smem, size = 0x4, offset = 0x4, fixed_abs, tag = 'smem constant byte address 0x4 - core index']
  #allocation1 [shape = 'u32[144,128]{1,0:T(1,128)}', space=vmem, size = 0x12000, scoped, tag = 'internal scratch']
  %s0 = inlined_call_operand.vmem [shape: f32[4], index: 0, kind: input, shape index: {}]
  %s1 = inlined_call_operand.hbm [shape: f32[16,256], index: 1, kind: input, shape index: {}]
  %s2 = inlined_call_operand.hbm [shape: f32[16,256], index: 2, kind: input, shape index: {}]
  %s3 = inlined_call_operand.vmem [shape: f32[16,1], index: 3, kind: input, shape index: {}]
  %s4 = inlined_call_operand.hbm [shape: f32[1,256], index: 4, kind: output, shape index: {}]
  %s5 = sld [smem:[#allocation0]]
  $region61: #{tpu_custom_call.1} parent=0
    _
  %s7 = ssub.s32 1, %s5
  %s8 = scalar_select 0, %s7, %s5
  $region1: #{tpu_custom_call.1} parent=0
    #allocation2 [shape = 'u8[512]{0}', space=smem, size = 0x200, scoped, tag = 'input window, operand 0, single buffered']
    #allocation3 [shape = 's32[2]{0}', space=sflag, size = 0x8, scoped, tag = 'scoped memory for tpu_custom_call.1']
    #allocation4 [shape = 's32[2]{0}', space=sflag, size = 0x8, scoped, tag = 'scoped memory for tpu_custom_call.1']
    #allocation5 [shape = 's32[2]{0}', space=sflag, size = 0x8, scoped, tag = 'scoped memory for tpu_custom_call.1']
    #allocation6 [shape = 'u8[16384]{0}', space=vmem, size = 0x4000, scoped, tag = 'input window, operand 1']
    #allocation7 [shape = 'u8[16384]{0}', space=vmem, size = 0x4000, scoped, tag = 'input window, operand 2']
    #allocation8 [shape = 's32[2]{0}', space=sflag, size = 0x8, scoped, tag = 'scoped memory for tpu_custom_call.1']
    #allocation9 [shape = 'u8[1024]{0}', space=vmem, size = 0x400, scoped, tag = 'output window, operand 0']
    %9 = vsyncpa [#allocation5], 0
    %10 = vsyncpa [#allocation3], 0
    %s11 = scalar_lea.sflag [#allocation3], 1
    %12 = vsyncpa %s11, 0
    %13 = vsyncpa [#allocation8], 0
    %s14 = scalar_lea.sflag [#allocation8], 1
    %15 = vsyncpa %s14, 0
    %16 = vsyncpa [#allocation4], 0
    %s17 = scalar_lea.sflag [#allocation4], 1
    %18 = vsyncpa %s17, 0
    loop: start=0, step=1, limit=4
    $region2: #{tpu_custom_call.1} parent=1 // loop_pre_header
      _
    $region3: #{tpu_custom_call.1} parent=1 // loop_header
      %s20 = sphi 0, %s24
      %p21 = scmp.ge.s32.totalorder %s20, 4
      %s28 = sphi 0, %s28
      %s30 = sphi 0, %s28
      %s31 = sphi 0, %s30
      %s45 = sphi 0, %s31
      %s51 = sphi 0, %s53
      %s54 = sphi 0, %s51
      %s55 = sphi 0, %s54
      %s71 = sphi 0, %s55
      %s77 = sphi 0, %s79
      %s80 = sphi 0, %s77
      %s81 = sphi 0, %s80
      %s97 = sphi 0, %s81
      %s101 = sphi 0, %s101
      %s103 = sphi 0, %s101
      %s104 = sphi 0, %s103
      %s118 = sphi 0, %s104
      %s124 = sphi 0, %s126
      %s127 = sphi 0, %s124
      %s128 = sphi 0, %s127
      %s144 = sphi 0, %s128
    $region4: #{tpu_custom_call.1} parent=1 // loop_header_branch
      %23 = sbr.rel (%p21) target = $region8
    $region5: #{tpu_custom_call.1} parent=1 // loop_body
      %s25 = ssub.s32 %s20, 1
      %s26 = ssub.s32 %s20, 2
      %s27 = sadd.s32 %s20, 1
      %s29 = sadd.s32 %s28, 1
      %p32 = scmp.eq.s32.totalorder %s20, 1
      %p33 = scmp.ne.s32.totalorder %s28, %s30
      %p34 = scmp.eq.s32.totalorder %s20, 0
      %p35 = por %p33, %p34
      %p36 = scmp.ne.s32.totalorder %s28, %s30
      %p37 = scmp.eq.s32.totalorder %s25, 1
      %p38 = por %p36, %p37
      %p39 = scmp.ne.s32.totalorder %s30, %s31
      %p40 = scmp.eq.s32.totalorder %s25, 0
      %p41 = por %p39, %p40
      %p42 = scmp.ne.s32.totalorder %s30, %s31
      %p43 = scmp.eq.s32.totalorder %s26, 1
      %p44 = por %p42, %p43
      %p46 = scmp.ne.s32.totalorder %s31, %s45
      %p47 = scmp.eq.s32.totalorder %s26, 0
      %p48 = por %p46, %p47
      %s49 = ssub.s32 %s20, %s27
      %p50 = scmp.eq.s32.totalorder %s49, 0
      %s52 = sadd.s32 %s51, 1
      %s53 = scalar_select %p50, %s51, %s52
      %p56 = pneg %p50
      %p57 = scmp.eq.s32.totalorder %s20, 1
      %p58 = por %p56, %p57
      %p59 = scmp.ne.s32.totalorder %s51, %s54
      %p60 = scmp.eq.s32.totalorder %s20, 0
      %p61 = por %p59, %p60
      %p62 = scmp.ne.s32.totalorder %s51, %s54
      %p63 = scmp.eq.s32.totalorder %s25, 1
      %p64 = por %p62, %p63
      %p65 = scmp.ne.s32.totalorder %s54, %s55
      %p66 = scmp.eq.s32.totalorder %s25, 0
      %p67 = por %p65, %p66
      %p68 = scmp.ne.s32.totalorder %s54, %s55
      %p69 = scmp.eq.s32.totalorder %s26, 1
      %p70 = por %p68, %p69
      %p72 = scmp.ne.s32.totalorder %s55, %s71
      %p73 = scmp.eq.s32.totalorder %s26, 0
      %p74 = por %p72, %p73
      %s75 = ssub.s32 %s20, %s27
      %p76 = scmp.eq.s32.totalorder %s75, 0
      %s78 = sadd.s32 %s77, 1
      %s79 = scalar_select %p76, %s77, %s78
      %p82 = pneg %p76
      %p83 = scmp.eq.s32.totalorder %s20, 1
      %p84 = por %p82, %p83
      %p85 = scmp.ne.s32.totalorder %s77, %s80
      %p86 = scmp.eq.s32.totalorder %s20, 0
      %p87 = por %p85, %p86
      %p88 = scmp.ne.s32.totalorder %s77, %s80
      %p89 = scmp.eq.s32.totalorder %s25, 1
      %p90 = por %p88, %p89
      %p91 = scmp.ne.s32.totalorder %s80, %s81
      %p92 = scmp.eq.s32.totalorder %s25, 0
      %p93 = por %p91, %p92
      %p94 = scmp.ne.s32.totalorder %s80, %s81
      %p95 = scmp.eq.s32.totalorder %s26, 1
      %p96 = por %p94, %p95
      %p98 = scmp.ne.s32.totalorder %s81, %s97
      %p99 = scmp.eq.s32.totalorder %s26, 0
      %p100 = por %p98, %p99
      %s102 = sadd.s32 %s101, 1
      %p105 = scmp.eq.s32.totalorder %s20, 1
      %p106 = scmp.ne.s32.totalorder %s101, %s103
      %p107 = scmp.eq.s32.totalorder %s20, 0
      %p108 = por %p106, %p107
      %p109 = scmp.ne.s32.totalorder %s101, %s103
      %p110 = scmp.eq.s32.totalorder %s25, 1
      %p111 = por %p109, %p110
      %p112 = scmp.ne.s32.totalorder %s103, %s104
      %p113 = scmp.eq.s32.totalorder %s25, 0
      %p114 = por %p112, %p113
      %p115 = scmp.ne.s32.totalorder %s103, %s104
      %p116 = scmp.eq.s32.totalorder %s26, 1
      %p117 = por %p115, %p116
      %p119 = scmp.ne.s32.totalorder %s104, %s118
      %p120 = scmp.eq.s32.totalorder %s26, 0
      %p121 = por %p119, %p120
      %s122 = ssub.s32 %s20, %s27
      %p123 = scmp.eq.s32.totalorder %s122, 0
      %s125 = sadd.s32 %s124, 1
      %s126 = scalar_select %p123, %s124, %s125
      %p129 = pneg %p123
      %p130 = scmp.eq.s32.totalorder %s20, 1
      %p131 = por %p129, %p130
      %p132 = scmp.ne.s32.totalorder %s124, %s127
      %p133 = scmp.eq.s32.totalorder %s20, 0
      %p134 = por %p132, %p133
      %p135 = scmp.ne.s32.totalorder %s124, %s127
      %p136 = scmp.eq.s32.totalorder %s25, 1
      %p137 = por %p135, %p136
      %p138 = scmp.ne.s32.totalorder %s127, %s128
      %p139 = scmp.eq.s32.totalorder %s25, 0
      %p140 = por %p138, %p139
      %p141 = scmp.ne.s32.totalorder %s127, %s128
      %p142 = scmp.eq.s32.totalorder %s26, 1
      %p143 = por %p141, %p142
      %p145 = scmp.ne.s32.totalorder %s128, %s144
      %p146 = scmp.eq.s32.totalorder %s26, 0
      %p147 = por %p145, %p146
      %p148 = scmp.le.s32.totalorder 1, %s20
      %p149 = scmp.lt.s32.totalorder %s20, 3
      %p150 = pnand %p148, %p149
      %p151 = pneg %p150
      // Predicated region
      $region9: #{tpu_custom_call.1} parent=5 // pred_check
        _
      $region10: #{tpu_custom_call.1} parent=5 // pred_check_branch
        %153 = sbr.rel (%p150) target = $region12
      $region11: #{tpu_custom_call.1} parent=5 // pred_region
        %s154 = ssub.s32 %s20, 1
        // Predicated region
        $region13: #{tpu_custom_call.1} parent=11 // pred_check
          %p155 = pneg %p41
        $region14: #{tpu_custom_call.1} parent=11 // pred_check_branch
          %157 = sbr.rel (%p155) target = $region16
        $region15: #{tpu_custom_call.1} parent=11 // pred_region
          %s159 = ssub.s32 16, 16
          %160 = vsyncadd [#allocation5], %s159
          %s162 = sshll.u32 %s0, 4
          %s163 = int_to_ptr.vmem [resolvable:$true] %s162
          %165 = dma.vmem_to_smem %s163, 16, [#allocation2], [#allocation5]
        $region16: #{tpu_custom_call.1} parent=11 // pred_fallthru
          _
        // Predicated region
        $region17: #{tpu_custom_call.1} parent=11 // pred_check
          %p166 = pneg %p114
        $region18: #{tpu_custom_call.1} parent=11 // pred_check_branch
          %168 = sbr.rel (%p166) target = $region20
        $region19: #{tpu_custom_call.1} parent=11 // pred_region
          _
        $region20: #{tpu_custom_call.1} parent=11 // pred_fallthru
          _
      $region12: #{tpu_custom_call.1} parent=5 // pred_fallthru
        _
      %p169 = scmp.lt.s32.totalorder %s20, 2
      // Predicated region
      $region21: #{tpu_custom_call.1} parent=5 // pred_check
        %p170 = pneg %p169
      $region22: #{tpu_custom_call.1} parent=5 // pred_check_branch
        %172 = sbr.rel (%p170) target = $region24
      $region23: #{tpu_custom_call.1} parent=5 // pred_region
        // Predicated region
        $region25: #{tpu_custom_call.1} parent=23 // pred_check
          %p173 = pneg %p61
        $region26: #{tpu_custom_call.1} parent=23 // pred_check_branch
          %175 = sbr.rel (%p173) target = $region28
        $region27: #{tpu_custom_call.1} parent=23 // pred_region
          %s176 = sand.u32 %s51, 1
          %s177 = scalar_lea.sflag [#allocation3], %s176
          %s178 = sand.u32 %s51, 1
          %s179 = smul.addr %s178, 16
          %s180 = scalar_lea.vmem [#allocation6], %s179
          %s182 = ssub.s32 256, 256
          %183 = vsyncadd %s177, %s182
          %s184 = smul.addr %s20, 128
          %s185 = scalar_lea.hbm %s1, %s184
          %s186 = sshll.u32 %s180, 4
          %s187 = int_to_ptr.vmem [resolvable:$true] %s186
          %192 = dma.hbm_to_vmem [thread:$0]  %s185, 256, %s187, %s177, 256, 128, 8
        $region28: #{tpu_custom_call.1} parent=23 // pred_fallthru
          _
        // Predicated region
        $region29: #{tpu_custom_call.1} parent=23 // pred_check
          %p193 = pneg %p87
        $region30: #{tpu_custom_call.1} parent=23 // pred_check_branch
          %195 = sbr.rel (%p193) target = $region32
        $region31: #{tpu_custom_call.1} parent=23 // pred_region
          %s196 = sand.u32 %s77, 1
          %s197 = scalar_lea.sflag [#allocation8], %s196
          %s198 = sand.u32 %s77, 1
          %s199 = smul.addr %s198, 16
          %s200 = scalar_lea.vmem [#allocation7], %s199
          %s202 = ssub.s32 256, 256
          %203 = vsyncadd %s197, %s202
          %s204 = smul.addr %s20, 128
          %s205 = scalar_lea.hbm %s2, %s204
          %s206 = sshll.u32 %s200, 4
          %s207 = int_to_ptr.vmem [resolvable:$true] %s206
          %212 = dma.hbm_to_vmem [thread:$0]  %s205, 256, %s207, %s197, 256, 128, 8
        $region32: #{tpu_custom_call.1} parent=23 // pred_fallthru
          _
      $region24: #{tpu_custom_call.1} parent=5 // pred_fallthru
        _
      %p213 = scmp.le.s32.totalorder 1, %s20
      %p214 = scmp.lt.s32.totalorder %s20, 3
      %p215 = pnand %p213, %p214
      %p216 = pneg %p215
      // Predicated region
      $region33: #{tpu_custom_call.1} parent=5 // pred_check
        _
      $region34: #{tpu_custom_call.1} parent=5 // pred_check_branch
        %218 = sbr.rel (%p215) target = $region36
      $region35: #{tpu_custom_call.1} parent=5 // pred_region
        %s219 = ssub.s32 %s20, 1
        // Predicated region
        $region37: #{tpu_custom_call.1} parent=35 // pred_check
          %p220 = pneg %p41
        $region38: #{tpu_custom_call.1} parent=35 // pred_check_branch
          %222 = sbr.rel (%p220) target = $region40
        $region39: #{tpu_custom_call.1} parent=35 // pred_region
          %223 = dma.done [#allocation5], 16
        $region40: #{tpu_custom_call.1} parent=35 // pred_fallthru
          _
        %s224 = sand.u32 %s54, 1
        %s225 = scalar_lea.sflag [#allocation3], %s224
        %s226 = sand.u32 %s54, 1
        %s227 = smul.addr %s226, 16
        %s228 = scalar_lea.vmem [#allocation6], %s227
        // Predicated region
        $region41: #{tpu_custom_call.1} parent=35 // pred_check
          %p229 = pneg %p67
        $region42: #{tpu_custom_call.1} parent=35 // pred_check_branch
          %231 = sbr.rel (%p229) target = $region44
        $region43: #{tpu_custom_call.1} parent=35 // pred_region
          %232 = dma.done %s225, 256
        $region44: #{tpu_custom_call.1} parent=35 // pred_fallthru
          _
        %s233 = sand.u32 %s80, 1
        %s234 = scalar_lea.sflag [#allocation8], %s233
        %s235 = sand.u32 %s80, 1
        %s236 = smul.addr %s235, 16
        %s237 = scalar_lea.vmem [#allocation7], %s236
        // Predicated region
        $region45: #{tpu_custom_call.1} parent=35 // pred_check
          %p238 = pneg %p93
        $region46: #{tpu_custom_call.1} parent=35 // pred_check_branch
          %240 = sbr.rel (%p238) target = $region48
        $region47: #{tpu_custom_call.1} parent=35 // pred_region
          %241 = dma.done %s234, 256
        $region48: #{tpu_custom_call.1} parent=35 // pred_fallthru
          _
        %242 = sfence
        %p243 = pneg %p41
        %p244 = pneg %p38
        %s245 = sand.u32 %s54, 1
        %s246 = scalar_lea.sflag [#allocation3], %s245
        %s247 = sand.u32 %s54, 1
        %s248 = smul.addr %s247, 16
        %s249 = scalar_lea.vmem [#allocation6], %s248
        %p250 = pneg %p67
        %p251 = pneg %p64
        %s252 = sand.u32 %s80, 1
        %s253 = scalar_lea.sflag [#allocation8], %s252
        %s254 = sand.u32 %s80, 1
        %s255 = smul.addr %s254, 16
        %s256 = scalar_lea.vmem [#allocation7], %s255
        %p257 = pneg %p93
        %p258 = pneg %p90
        %p259 = pneg %p114
        %p260 = pneg %p111
        %p261 = pneg %p140
        %p262 = pneg %p137
        %s263 = sand.u32 %s127, 1
        %s264 = scalar_lea.sflag [#allocation4], %s263
        %s265 = sand.u32 %s127, 1
        %s266 = scalar_lea.vmem [#allocation9], %s265
        %s267 = sld [smem:[#allocation2]]
        %s268 = sld [smem:[#allocation2 + $0x1]]
        %s269 = sld [smem:[#allocation2 + $0x2]]
        %s270 = sld [smem:[#allocation2 + $0x3]]
        %v271 = vld [vmem:[%s228] sm:$0xff]
        %v272 = vld [vmem:[%s228 + $0x8] sm:$0xff]
        %v273 = vstv %s267
        %v274 = vmul.f32 %v273, %v271
        %v275 = vmul.f32 %v273, %v272
        %v276 = vld [vmem:[%s237] sm:$0xff]
        %v277 = vld [vmem:[%s237 + $0x8] sm:$0xff]
        %v278 = vstv %s268
        %v279 = vmul.f32 %v278, %v276
        %v280 = vmul.f32 %v278, %v277
        %v281 = vadd.f32 %v274, %v279
        %v282 = vadd.f32 %v275, %v280
        %v283 = vstv %s269
        %v284 = vadd.f32 %v281, %v283
        %v285 = vadd.f32 %v282, %v283
        %v286 = vld [vmem:[%s3] sm:$0xff]
        %v287 = vld [vmem:[%s3 + $0x8] sm:$0xff]
        %289 = vset.pattern.permute.xlu0 0
        %290 = vperm.xlu0 %289, %v286
        %v291 = vpop.permute.xlu0 %290
        %294 = vset.pattern.permute.xlu0 0
        %295 = vperm.xlu0 %294, %v287
        %v296 = vpop.permute.xlu0 %295
        %v298 = vmul.f32 %v284, %v291
        %v299 = vmul.f32 %v285, %v296
        %v300 = vadd.f32 %v298, %v299
        %v301 = vrot.slane %v300, 4
        %v302 = vadd.f32 %v300, %v301
        %v303 = vrot.slane %v302, 2
        %v304 = vadd.f32 %v302, %v303
        %v305 = vrot.slane %v304, 1
        %v306 = vadd.f32 %v304, %v305
        %v307 = vstv %s270
        %v308 = vadd.f32 %v306, %v307
        %v309 = vxor.u32 %v308, 2147483648
        %v310 = vmul.f32 %v309, 1.442695
        %v311 = vpow.pop %v310
        %v312 = vadd.f32 %v311, 1.0
        %v313 = vrcp.pop %v312
        %v314 = vmul.f32 1.0, %v313
        %315 = vst [vmem:[%s266] sm:$0x1] %v314
        %s316 = sand.u32 %s127, 1
        %s317 = scalar_lea.sflag [#allocation4], %s316
        %s318 = sand.u32 %s127, 1
        %s319 = scalar_lea.vmem [#allocation9], %s318
        // Predicated region
        $region49: #{tpu_custom_call.1} parent=35 // pred_check
          %p320 = pneg %p137
        $region50: #{tpu_custom_call.1} parent=35 // pred_check_branch
          %322 = sbr.rel (%p320) target = $region52
        $region51: #{tpu_custom_call.1} parent=35 // pred_region
          %s324 = ssub.s32 16, 16
          %325 = vsyncadd %s317, %s324
          %s326 = smul.addr %s25, 16
          %s327 = scalar_lea.hbm %s4, %s326
          %s329 = sshll.u32 %s319, 4
          %s330 = int_to_ptr.vmem [resolvable:$true] %s329
          %332 = dma.vmem_to_hbm [thread:$0]  %s330, 16, %s327, %s317
        $region52: #{tpu_custom_call.1} parent=35 // pred_fallthru
          _
      $region36: #{tpu_custom_call.1} parent=5 // pred_fallthru
        _
      %p333 = scmp.le.s32.totalorder 2, %s20
      // Predicated region
      $region53: #{tpu_custom_call.1} parent=5 // pred_check
        %p334 = pneg %p333
      $region54: #{tpu_custom_call.1} parent=5 // pred_check_branch
        %336 = sbr.rel (%p334) target = $region56
      $region55: #{tpu_custom_call.1} parent=5 // pred_region
        %s337 = ssub.s32 %s20, 2
        // Predicated region
        $region57: #{tpu_custom_call.1} parent=55 // pred_check
          %p338 = pneg %p143
        $region58: #{tpu_custom_call.1} parent=55 // pred_check_branch
          %340 = sbr.rel (%p338) target = $region60
        $region59: #{tpu_custom_call.1} parent=55 // pred_region
          %s341 = sand.u32 %s128, 1
          %s342 = scalar_lea.sflag [#allocation4], %s341
          %s343 = sand.u32 %s128, 1
          %s344 = scalar_lea.vmem [#allocation9], %s343
          %345 = dma.done %s342, 16
        $region60: #{tpu_custom_call.1} parent=55 // pred_fallthru
          _
      $region56: #{tpu_custom_call.1} parent=5 // pred_fallthru
        _
    $region6: #{tpu_custom_call.1} parent=1 // loop_footer
      %s24 = sadd.s32 1, %s20
    $region7: #{tpu_custom_call.1} parent=1 // loop_footer_branch
      %19 = sbr.rel target = $region3
    $region8: #{tpu_custom_call.1} parent=1 // loop_exit
      _
    %346 = vsyncpa [#allocation3], 1
    %s347 = scalar_lea.sflag [#allocation3], 1
    %348 = vsyncpa %s347, 1
    %349 = vsyncpa [#allocation8], 1
    %s350 = scalar_lea.sflag [#allocation8], 1
    %351 = vsyncpa %s350, 1
    %352 = vsyncpa [#allocation4], 1
    %s353 = scalar_lea.sflag [#allocation4], 1
    %354 = vsyncpa %s353, 1
    %355 = vsyncpa [#allocation5], 1
    %s356 = scalar_lea.sflag [#allocation5], 1
    %357 = vsyncpa %s356, 1

</llo_original>
